<compile_context>
chip_gen: v6e
topology: v6e:2x2x1
jax: 0.10.0
libtpu: 0.0.40
codegen_flags: <defaults>
</compile_context>

<pallas_src>
import functools

import jax
import jax.numpy as jnp
import numpy as np
from jax import lax
from jax.experimental import pallas as pl
from jax.experimental.pallas import tpu as pltpu


# ----------------------------- Pallas kernel --------------------------------
def _bidir_rnn_kernel(s_ref, w_ref, h0_ref, out_ref, hn_ref):
    """Fused bidirectional tanh-RNN recurrence, one time-chunk per grid step.

    Packed layout: lane dim is [fwd | bwd]; the backward direction is
    pre-reversed along time in the wrapper, so both directions advance with the
    same kernel time index and each step is a single block-diagonal matmul.

    s_ref   : (TC, B, 2H)  input-projection chunk (packed, bwd half time-reversed)
    w_ref   : (2H, 2H)     blockdiag(W_hh_fwd, W_hh_bwd), pre-transposed (h @ W)
    h0_ref  : (B, 2H)      packed initial state [h0_fwd | h0_bwd]
    out_ref : (TC, B, 2H)  packed output chunk (full-row, lane-dense stores)
    hn_ref  : (B, 2H)      packed carry / final state (resident across the grid)
    """
    @pl.when(pl.program_id(0) == 0)
    def _():
        hn_ref[...] = h0_ref[...]

    w = w_ref[...]
    tc = s_ref.shape[0]

    def step(t, h):
        h = jnp.tanh(s_ref[t] + jnp.dot(h, w, preferred_element_type=jnp.float32))
        out_ref[t] = h          # full (B, 2H) row write: no masked sub-lane stores
        return h

    # tc is a small trace-time constant (the time chunk), so a full unroll keeps
    # LLO scheduler visibility while the chunk size bounds instruction memory.
    hn_ref[...] = lax.fori_loop(0, tc, step, hn_ref[...], unroll=True)


def _choose_time_chunk(T, max_chunk=16):
    tc = min(T, max_chunk)
    while T % tc:
        tc -= 1
    return tc


def bidir_rnn_layer(s_packed, w_blk, h0_packed, *, max_chunk=16):
    """s_packed: (T, B, 2H) f32, w_blk: (2H, 2H), h0_packed: (B, 2H).

    Returns (out_packed (T, B, 2H), hn_packed (B, 2H)).  The backward half of
    both s_packed and out_packed is time-reversed (kernel-internal layout).
    """
    T, B, H2 = s_packed.shape
    tc = _choose_time_chunk(T, max_chunk)
    n_chunks = T // tc

    # Resident footprint: double-buffered s/out chunks + weights + h0/hn carry.
    footprint = 4 * (2 * 2 * tc * B * H2 + 2 * H2 * H2 + 3 * 2 * B * H2)
    vmem_limit = int(min(max(4 * footprint, 4 << 20), 48 << 20))

    out, hn = pl.pallas_call(
        _bidir_rnn_kernel,
        out_shape=(jax.ShapeDtypeStruct((T, B, H2), jnp.float32),
                   jax.ShapeDtypeStruct((B, H2), jnp.float32)),
        grid=(n_chunks,),
        in_specs=[
            pl.BlockSpec((tc, B, H2), lambda c: (c, 0, 0)),   # stream s chunks
            pl.BlockSpec((H2, H2), lambda c: (0, 0)),         # W_hh stays resident
            pl.BlockSpec((B, H2), lambda c: (0, 0)),          # h0
        ],
        out_specs=(
            pl.BlockSpec((tc, B, H2), lambda c: (c, 0, 0)),   # stream out chunks
            pl.BlockSpec((B, H2), lambda c: (0, 0)),          # hn = carry (resident)
        ),
        compiler_params=pltpu.CompilerParams(
            dimension_semantics=("arbitrary",),   # sequential carry across chunks
            vmem_limit_bytes=vmem_limit),
    )(s_packed, w_blk, h0_packed)
    return out, hn


# ----------------------------- Encoder glue ----------------------------------
def init_encoder_params(key, vocab, hidden, num_layers):
    """Deterministic init matching nn.Embedding + nn.RNN(bidirectional=True) shapes."""
    params = {}
    k_emb, key = jax.random.split(key)
    params["embedding"] = jax.random.normal(k_emb, (vocab, hidden), jnp.float32)

    bound = 1.0 / np.sqrt(hidden)
    layers = []
    for l in range(num_layers):
        h_in = hidden if l == 0 else 2 * hidden
        per_dir = {}
        for d in ("fwd", "bwd"):
            key, k1, k2, k3, k4 = jax.random.split(key, 5)
            # torch stores W_ih: (H, Hin), W_hh: (H, H); pre-transposed for x @ W.
            w_ih = jax.random.uniform(k1, (h_in, hidden), jnp.float32, -bound, bound)
            w_hh = jax.random.uniform(k2, (hidden, hidden), jnp.float32, -bound, bound)
            b_ih = jax.random.uniform(k3, (hidden,), jnp.float32, -bound, bound)
            b_hh = jax.random.uniform(k4, (hidden,), jnp.float32, -bound, bound)
            per_dir[d] = (w_ih, w_hh, b_ih + b_hh)
        wih_f, whh_f, b_f = per_dir["fwd"]
        wih_b, whh_b, b_b = per_dir["bwd"]
        zeros = jnp.zeros((hidden, hidden), jnp.float32)
        w_hh_blk = jnp.concatenate(
            [jnp.concatenate([whh_f, zeros], axis=1),
             jnp.concatenate([zeros, whh_b], axis=1)], axis=0)       # (2H, 2H)
        layers.append({
            "fwd": per_dir["fwd"], "bwd": per_dir["bwd"],            # for the reference
            "w_ih_cat": jnp.concatenate([wih_f, wih_b], axis=1),     # (Hin, 2H)
            "bias_cat": jnp.concatenate([b_f, b_b]),                 # (2H,)
            "w_hh_blk": w_hh_blk,
        })
    params["layers"] = layers
    return params


def _input_projection(x_aligned, w_ih_cat, bias_cat):
    # Hoisted off the serial recurrence chain; DEFAULT precision (perf review:
    # HIGHEST runs the multi-pass MXU algorithm on the only throughput matmul).
    return jnp.einsum("tbi,ih->tbh", x_aligned, w_ih_cat) + bias_cat


def encoder_forward(params, x_tokens, state):
    """x_tokens: (T, B) int32; state: (2*L, B, H).  Returns ((T,B,2H), (2*L,B,H))."""
    H = params["embedding"].shape[1]
    emb = jnp.take(params["embedding"], x_tokens, axis=0)   # (T, B, H) gather
    x_aligned = emb
    finals = []
    for l, layer in enumerate(params["layers"]):
        s_aligned = _input_projection(x_aligned, layer["w_ih_cat"], layer["bias_cat"])
        # Pack: reverse the bwd half along time so the kernel walks both
        # directions with one index and one block-diagonal matmul per step.
        s_packed = jnp.concatenate(
            [s_aligned[:, :, :H], s_aligned[::-1, :, H:]], axis=-1)
        h0 = jnp.concatenate([state[2 * l], state[2 * l + 1]], axis=-1)  # (B, 2H)

        out_packed, hn = bidir_rnn_layer(s_packed, layer["w_hh_blk"], h0)

        # Unpack back to the PyTorch bidirectional-concat, forward-time layout.
        x_aligned = jnp.concatenate(
            [out_packed[:, :, :H], out_packed[::-1, :, H:]], axis=-1)
        finals.append(hn[:, :H])
        finals.append(hn[:, H:])
    return x_aligned, jnp.stack(finals, axis=0)


# ----------------------------- pure-JAX reference ----------------------------
def _ref_single_dir(s_dir, w_hh, h0):
    def step(h, s_t):
        h_new = jnp.tanh(s_t + jnp.dot(h, w_hh, precision=lax.Precision.HIGHEST))
        return h_new, h_new
    _, ys = lax.scan(step, h0, s_dir)
    return ys


def encoder_forward_ref(params, x_tokens, state):
    H = params["embedding"].shape[1]
    emb = jnp.take(params["embedding"], x_tokens, axis=0)
    layer_in = emb
    finals = []
    for l, layer in enumerate(params["layers"]):
        _, whh_f, _ = layer["fwd"]
        _, whh_b, _ = layer["bwd"]
        s_aligned = _input_projection(layer_in, layer["w_ih_cat"], layer["bias_cat"])
        out_f = _ref_single_dir(s_aligned[:, :, :H], whh_f, state[2 * l])
        out_b_rev = _ref_single_dir(s_aligned[::-1, :, H:], whh_b, state[2 * l + 1])
        finals.append(out_f[-1])
        finals.append(out_b_rev[-1])
        layer_in = jnp.concatenate([out_f, out_b_rev[::-1]], axis=-1)
    return layer_in, jnp.stack(finals, axis=0)


# ----------------------------- main ------------------------------------------
if __name__ == "__main__":
    V = 16          # vocab size (len(encoding.char_by_idx))
    H = 32          # hidden_size
    L = 2           # num_layers
    T = 8           # sequence length
    B = 8           # batch (sublane multiple; perf review: fill vreg rows)

    key = jax.random.PRNGKey(0)
    k_params, k_tok, k_state = jax.random.split(key, 3)

    params = init_encoder_params(k_params, V, H, L)
    x_tokens = jax.random.randint(k_tok, (T, B), 0, V, jnp.int32)
    state = jax.random.normal(k_state, (2 * L, B, H), jnp.float32)

    fwd = jax.jit(functools.partial(encoder_forward, params))
    out, h_n = fwd(x_tokens, state)
    out = jax.block_until_ready(out)
    h_n = jax.block_until_ready(h_n)

    out_ref, h_n_ref = encoder_forward_ref(params, x_tokens, state)
    np.testing.assert_allclose(np.asarray(out), np.asarray(out_ref), rtol=1e-4, atol=1e-4)
    np.testing.assert_allclose(np.asarray(h_n), np.asarray(h_n_ref), rtol=1e-4, atol=1e-4)

    assert out.shape == (T, B, 2 * H)
    assert h_n.shape == (2 * L, B, H)
    print("KERNEL_OK")
</pallas_src>

<mosaic_0001>
module attributes {stable_mosaic.version = 11 : i64} {
  func.func @_bidir_rnn_kernel(%arg0: i32, %arg1: memref<8x8x64xf32, #tpu.memory_space<vmem>>, %arg2: memref<64x64xf32, #tpu.memory_space<vmem>>, %arg3: memref<8x64xf32, #tpu.memory_space<vmem>>, %arg4: memref<8x8x64xf32, #tpu.memory_space<vmem>>, %arg5: memref<8x64xf32, #tpu.memory_space<vmem>>) attributes {dimension_semantics = [#tpu.dimension_semantics<arbitrary>], iteration_bounds = array<i64: 1>, scalar_prefetch = 0 : i64, scratch_operands = 0 : i64, tpu.core_type = #tpu.core_type<tc>, window_params = [{transform_indices = @transform_0, window_bounds = array<i64: 8, 8, 64>}, {pipeline_mode = #tpu.pipeline_mode<synchronous>, transform_indices = @transform_1, window_bounds = array<i64: 64, 64>}, {pipeline_mode = #tpu.pipeline_mode<synchronous>, transform_indices = @transform_2, window_bounds = array<i64: 8, 64>}, {transform_indices = @transform_3, window_bounds = array<i64: 8, 8, 64>}, {pipeline_mode = #tpu.pipeline_mode<synchronous>, transform_indices = @transform_4, window_bounds = array<i64: 8, 64>}]} {
    %c0_i32 = arith.constant 0 : i32
    %0 = arith.cmpi eq, %arg0, %c0_i32 : i32
    %1 = arith.extui %0 : i1 to i32
    %c0_i32_0 = arith.constant 0 : i32
    %2 = arith.cmpi ne, %1, %c0_i32_0 : i32
    scf.if %2 {
      %c0_46 = arith.constant 0 : index
      %c0_47 = arith.constant 0 : index
      %86 = vector.load %arg3[%c0_46, %c0_47] : memref<8x64xf32, #tpu.memory_space<vmem>>, vector<8x64xf32>
      %c0_48 = arith.constant 0 : index
      %c0_49 = arith.constant 0 : index
      %87 = vector.load %arg5[%c0_48, %c0_49] : memref<8x64xf32, #tpu.memory_space<vmem>>, vector<8x64xf32>
      tpu.vector_store %arg5[%c0_48, %c0_49], %86 {strides = array<i32>} : memref<8x64xf32, #tpu.memory_space<vmem>>, vector<8x64xf32>,
    } else {
    }
    %c0 = arith.constant 0 : index
    %c0_1 = arith.constant 0 : index
    %3 = vector.load %arg2[%c0, %c0_1] : memref<64x64xf32, #tpu.memory_space<vmem>>, vector<64x64xf32>
    %c0_2 = arith.constant 0 : index
    %c0_3 = arith.constant 0 : index
    %4 = vector.load %arg5[%c0_2, %c0_3] : memref<8x64xf32, #tpu.memory_space<vmem>>, vector<8x64xf32>
    %c0_i32_4 = arith.constant 0 : i32
    %5 = arith.index_cast %c0_i32_4 : i32 to index
    %c0_5 = arith.constant 0 : index
    %c0_6 = arith.constant 0 : index
    %6 = vector.load %arg1[%5, %c0_5, %c0_6] : memref<8x8x64xf32, #tpu.memory_space<vmem>>, vector<1x8x64xf32>
    %7 = vector.shape_cast %6 : vector<1x8x64xf32> to vector<8x64xf32>
    %cst = arith.constant dense<0.000000e+00> : vector<8x64xf32>
    %8 = tpu.matmul %4, %3, %cst {dimension_numbers = #tpu.dot_dimension_numbers<[1], [0], [0], [1], [0, 0, 1, 1], [], []>} : vector<8x64xf32>, vector<64x64xf32>, vector<8x64xf32> -> vector<8x64xf32>
    %9 = arith.addf %7, %8 : vector<8x64xf32>
    %10 = math.tanh %9 : vector<8x64xf32>
    %11 = arith.index_cast %c0_i32_4 : i32 to index
    %c0_7 = arith.constant 0 : index
    %c0_8 = arith.constant 0 : index
    %12 = vector.load %arg4[%11, %c0_7, %c0_8] : memref<8x8x64xf32, #tpu.memory_space<vmem>>, vector<1x8x64xf32>
    %13 = vector.shape_cast %12 : vector<1x8x64xf32> to vector<8x64xf32>
    %14 = vector.shape_cast %10 : vector<8x64xf32> to vector<1x8x64xf32>
    tpu.vector_store %arg4[%11, %c0_7, %c0_8], %14 {strides = array<i32>} : memref<8x8x64xf32, #tpu.memory_space<vmem>>, vector<1x8x64xf32>,
    %c1_i32 = arith.constant 1 : i32
    %15 = arith.index_cast %c1_i32 : i32 to index
    %c0_9 = arith.constant 0 : index
    %c0_10 = arith.constant 0 : index
    %16 = vector.load %arg1[%15, %c0_9, %c0_10] : memref<8x8x64xf32, #tpu.memory_space<vmem>>, vector<1x8x64xf32>
    %17 = vector.shape_cast %16 : vector<1x8x64xf32> to vector<8x64xf32>
    %cst_11 = arith.constant dense<0.000000e+00> : vector<8x64xf32>
    %18 = tpu.matmul %10, %3, %cst_11 {dimension_numbers = #tpu.dot_dimension_numbers<[1], [0], [0], [1], [0, 0, 1, 1], [], []>} : vector<8x64xf32>, vector<64x64xf32>, vector<8x64xf32> -> vector<8x64xf32>
    %19 = arith.addf %17, %18 : vector<8x64xf32>
    %20 = math.tanh %19 : vector<8x64xf32>
    %21 = arith.index_cast %c1_i32 : i32 to index
    %c0_12 = arith.constant 0 : index
    %c0_13 = arith.constant 0 : index
    %22 = vector.load %arg4[%21, %c0_12, %c0_13] : memref<8x8x64xf32, #tpu.memory_space<vmem>>, vector<1x8x64xf32>
    %23 = vector.shape_cast %22 : vector<1x8x64xf32> to vector<8x64xf32>
    %24 = vector.shape_cast %20 : vector<8x64xf32> to vector<1x8x64xf32>
    tpu.vector_store %arg4[%21, %c0_12, %c0_13], %24 {strides = array<i32>} : memref<8x8x64xf32, #tpu.memory_space<vmem>>, vector<1x8x64xf32>,
    %c2_i32 = arith.constant 2 : i32
    %25 = arith.index_cast %c2_i32 : i32 to index
    %c0_14 = arith.constant 0 : index
    %c0_15 = arith.constant 0 : index
    %26 = vector.load %arg1[%25, %c0_14, %c0_15] : memref<8x8x64xf32, #tpu.memory_space<vmem>>, vector<1x8x64xf32>
    %27 = vector.shape_cast %26 : vector<1x8x64xf32> to vector<8x64xf32>
    %cst_16 = arith.constant dense<0.000000e+00> : vector<8x64xf32>
    %28 = tpu.matmul %20, %3, %cst_16 {dimension_numbers = #tpu.dot_dimension_numbers<[1], [0], [0], [1], [0, 0, 1, 1], [], []>} : vector<8x64xf32>, vector<64x64xf32>, vector<8x64xf32> -> vector<8x64xf32>
    %29 = arith.addf %27, %28 : vector<8x64xf32>
    %30 = math.tanh %29 : vector<8x64xf32>
    %31 = arith.index_cast %c2_i32 : i32 to index
    %c0_17 = arith.constant 0 : index
    %c0_18 = arith.constant 0 : index
    %32 = vector.load %arg4[%31, %c0_17, %c0_18] : memref<8x8x64xf32, #tpu.memory_space<vmem>>, vector<1x8x64xf32>
    %33 = vector.shape_cast %32 : vector<1x8x64xf32> to vector<8x64xf32>
    %34 = vector.shape_cast %30 : vector<8x64xf32> to vector<1x8x64xf32>
    tpu.vector_store %arg4[%31, %c0_17, %c0_18], %34 {strides = array<i32>} : memref<8x8x64xf32, #tpu.memory_space<vmem>>, vector<1x8x64xf32>,
    %c3_i32 = arith.constant 3 : i32
    %35 = arith.index_cast %c3_i32 : i32 to index
    %c0_19 = arith.constant 0 : index
    %c0_20 = arith.constant 0 : index
    %36 = vector.load %arg1[%35, %c0_19, %c0_20] : memref<8x8x64xf32, #tpu.memory_space<vmem>>, vector<1x8x64xf32>
    %37 = vector.shape_cast %36 : vector<1x8x64xf32> to vector<8x64xf32>
    %cst_21 = arith.constant dense<0.000000e+00> : vector<8x64xf32>
    %38 = tpu.matmul %30, %3, %cst_21 {dimension_numbers = #tpu.dot_dimension_numbers<[1], [0], [0], [1], [0, 0, 1, 1], [], []>} : vector<8x64xf32>, vector<64x64xf32>, vector<8x64xf32> -> vector<8x64xf32>
    %39 = arith.addf %37, %38 : vector<8x64xf32>
    %40 = math.tanh %39 : vector<8x64xf32>
    %41 = arith.index_cast %c3_i32 : i32 to index
    %c0_22 = arith.constant 0 : index
    %c0_23 = arith.constant 0 : index
    %42 = vector.load %arg4[%41, %c0_22, %c0_23] : memref<8x8x64xf32, #tpu.memory_space<vmem>>, vector<1x8x64xf32>
    %43 = vector.shape_cast %42 : vector<1x8x64xf32> to vector<8x64xf32>
    %44 = vector.shape_cast %40 : vector<8x64xf32> to vector<1x8x64xf32>
    tpu.vector_store %arg4[%41, %c0_22, %c0_23], %44 {strides = array<i32>} : memref<8x8x64xf32, #tpu.memory_space<vmem>>, vector<1x8x64xf32>,
    %c4_i32 = arith.constant 4 : i32
    %45 = arith.index_cast %c4_i32 : i32 to index
    %c0_24 = arith.constant 0 : index
    %c0_25 = arith.constant 0 : index
    %46 = vector.load %arg1[%45, %c0_24, %c0_25] : memref<8x8x64xf32, #tpu.memory_space<vmem>>, vector<1x8x64xf32>
    %47 = vector.shape_cast %46 : vector<1x8x64xf32> to vector<8x64xf32>
    %cst_26 = arith.constant dense<0.000000e+00> : vector<8x64xf32>
    %48 = tpu.matmul %40, %3, %cst_26 {dimension_numbers = #tpu.dot_dimension_numbers<[1], [0], [0], [1], [0, 0, 1, 1], [], []>} : vector<8x64xf32>, vector<64x64xf32>, vector<8x64xf32> -> vector<8x64xf32>
    %49 = arith.addf %47, %48 : vector<8x64xf32>
    %50 = math.tanh %49 : vector<8x64xf32>
    %51 = arith.index_cast %c4_i32 : i32 to index
    %c0_27 = arith.constant 0 : index
    %c0_28 = arith.constant 0 : index
    %52 = vector.load %arg4[%51, %c0_27, %c0_28] : memref<8x8x64xf32, #tpu.memory_space<vmem>>, vector<1x8x64xf32>
    %53 = vector.shape_cast %52 : vector<1x8x64xf32> to vector<8x64xf32>
    %54 = vector.shape_cast %50 : vector<8x64xf32> to vector<1x8x64xf32>
    tpu.vector_store %arg4[%51, %c0_27, %c0_28], %54 {strides = array<i32>} : memref<8x8x64xf32, #tpu.memory_space<vmem>>, vector<1x8x64xf32>,
    %c5_i32 = arith.constant 5 : i32
    %55 = arith.index_cast %c5_i32 : i32 to index
    %c0_29 = arith.constant 0 : index
    %c0_30 = arith.constant 0 : index
    %56 = vector.load %arg1[%55, %c0_29, %c0_30] : memref<8x8x64xf32, #tpu.memory_space<vmem>>, vector<1x8x64xf32>
    %57 = vector.shape_cast %56 : vector<1x8x64xf32> to vector<8x64xf32>
    %cst_31 = arith.constant dense<0.000000e+00> : vector<8x64xf32>
    %58 = tpu.matmul %50, %3, %cst_31 {dimension_numbers = #tpu.dot_dimension_numbers<[1], [0], [0], [1], [0, 0, 1, 1], [], []>} : vector<8x64xf32>, vector<64x64xf32>, vector<8x64xf32> -> vector<8x64xf32>
    %59 = arith.addf %57, %58 : vector<8x64xf32>
    %60 = math.tanh %59 : vector<8x64xf32>
    %61 = arith.index_cast %c5_i32 : i32 to index
    %c0_32 = arith.constant 0 : index
    %c0_33 = arith.constant 0 : index
    %62 = vector.load %arg4[%61, %c0_32, %c0_33] : memref<8x8x64xf32, #tpu.memory_space<vmem>>, vector<1x8x64xf32>
    %63 = vector.shape_cast %62 : vector<1x8x64xf32> to vector<8x64xf32>
    %64 = vector.shape_cast %60 : vector<8x64xf32> to vector<1x8x64xf32>
    tpu.vector_store %arg4[%61, %c0_32, %c0_33], %64 {strides = array<i32>} : memref<8x8x64xf32, #tpu.memory_space<vmem>>, vector<1x8x64xf32>,
    %c6_i32 = arith.constant 6 : i32
    %65 = arith.index_cast %c6_i32 : i32 to index
    %c0_34 = arith.constant 0 : index
    %c0_35 = arith.constant 0 : index
    %66 = vector.load %arg1[%65, %c0_34, %c0_35] : memref<8x8x64xf32, #tpu.memory_space<vmem>>, vector<1x8x64xf32>
    %67 = vector.shape_cast %66 : vector<1x8x64xf32> to vector<8x64xf32>
    %cst_36 = arith.constant dense<0.000000e+00> : vector<8x64xf32>
    %68 = tpu.matmul %60, %3, %cst_36 {dimension_numbers = #tpu.dot_dimension_numbers<[1], [0], [0], [1], [0, 0, 1, 1], [], []>} : vector<8x64xf32>, vector<64x64xf32>, vector<8x64xf32> -> vector<8x64xf32>
    %69 = arith.addf %67, %68 : vector<8x64xf32>
    %70 = math.tanh %69 : vector<8x64xf32>
    %71 = arith.index_cast %c6_i32 : i32 to index
    %c0_37 = arith.constant 0 : index
    %c0_38 = arith.constant 0 : index
    %72 = vector.load %arg4[%71, %c0_37, %c0_38] : memref<8x8x64xf32, #tpu.memory_space<vmem>>, vector<1x8x64xf32>
    %73 = vector.shape_cast %72 : vector<1x8x64xf32> to vector<8x64xf32>
    %74 = vector.shape_cast %70 : vector<8x64xf32> to vector<1x8x64xf32>
    tpu.vector_store %arg4[%71, %c0_37, %c0_38], %74 {strides = array<i32>} : memref<8x8x64xf32, #tpu.memory_space<vmem>>, vector<1x8x64xf32>,
    %c7_i32 = arith.constant 7 : i32
    %75 = arith.index_cast %c7_i32 : i32 to index
    %c0_39 = arith.constant 0 : index
    %c0_40 = arith.constant 0 : index
    %76 = vector.load %arg1[%75, %c0_39, %c0_40] : memref<8x8x64xf32, #tpu.memory_space<vmem>>, vector<1x8x64xf32>
    %77 = vector.shape_cast %76 : vector<1x8x64xf32> to vector<8x64xf32>
    %cst_41 = arith.constant dense<0.000000e+00> : vector<8x64xf32>
    %78 = tpu.matmul %70, %3, %cst_41 {dimension_numbers = #tpu.dot_dimension_numbers<[1], [0], [0], [1], [0, 0, 1, 1], [], []>} : vector<8x64xf32>, vector<64x64xf32>, vector<8x64xf32> -> vector<8x64xf32>
    %79 = arith.addf %77, %78 : vector<8x64xf32>
    %80 = math.tanh %79 : vector<8x64xf32>
    %81 = arith.index_cast %c7_i32 : i32 to index
    %c0_42 = arith.constant 0 : index
    %c0_43 = arith.constant 0 : index
    %82 = vector.load %arg4[%81, %c0_42, %c0_43] : memref<8x8x64xf32, #tpu.memory_space<vmem>>, vector<1x8x64xf32>
    %83 = vector.shape_cast %82 : vector<1x8x64xf32> to vector<8x64xf32>
    %84 = vector.shape_cast %80 : vector<8x64xf32> to vector<1x8x64xf32>
    tpu.vector_store %arg4[%81, %c0_42, %c0_43], %84 {strides = array<i32>} : memref<8x8x64xf32, #tpu.memory_space<vmem>>, vector<1x8x64xf32>,
    %c8_i32 = arith.constant 8 : i32
    %c0_44 = arith.constant 0 : index
    %c0_45 = arith.constant 0 : index
    %85 = vector.load %arg5[%c0_44, %c0_45] : memref<8x64xf32, #tpu.memory_space<vmem>>, vector<8x64xf32>
    tpu.vector_store %arg5[%c0_44, %c0_45], %80 {strides = array<i32>} : memref<8x64xf32, #tpu.memory_space<vmem>>, vector<8x64xf32>,
    return
  }
  func.func @transform_0(%arg0: i32) -> (i32, i32, i32) {
    %c0_i32 = arith.constant 0 : i32
    %c0_i32_0 = arith.constant 0 : i32
    %c0_i32_1 = arith.constant 0 : i32
    return %arg0, %c0_i32, %c0_i32_0 : i32, i32, i32
  }
  func.func @transform_1(%arg0: i32) -> (i32, i32) {
    %c0_i32 = arith.constant 0 : i32
    %c0_i32_0 = arith.constant 0 : i32
    %c0_i32_1 = arith.constant 0 : i32
    return %c0_i32, %c0_i32_0 : i32, i32
  }
  func.func @transform_2(%arg0: i32) -> (i32, i32) {
    %c0_i32 = arith.constant 0 : i32
    %c0_i32_0 = arith.constant 0 : i32
    %c0_i32_1 = arith.constant 0 : i32
    return %c0_i32, %c0_i32_0 : i32, i32
  }
  func.func @transform_3(%arg0: i32) -> (i32, i32, i32) {
    %c0_i32 = arith.constant 0 : i32
    %c0_i32_0 = arith.constant 0 : i32
    %c0_i32_1 = arith.constant 0 : i32
    return %arg0, %c0_i32, %c0_i32_0 : i32, i32, i32
  }
  func.func @transform_4(%arg0: i32) -> (i32, i32) {
    %c0_i32 = arith.constant 0 : i32
    %c0_i32_0 = arith.constant 0 : i32
    %c0_i32_1 = arith.constant 0 : i32
    return %c0_i32, %c0_i32_0 : i32, i32
  }
}

</mosaic_0001>

<llo_original>
// kernel: encoder_forward.2
$region0: #{encoder_forward.2}
  #allocation0 [shape = 'u32[]', space=smem, size = 0x4, offset = 0x4, fixed_abs, tag = 'smem constant byte address 0x4 - core index']
  #allocation1 [shape = 'u32[144,128]{1,0:T(1,128)}', space=vmem, size = 0x12000, scoped, tag = 'internal scratch']
  %s0 = inlined_call_operand.vmem [shape: f32[8,8,64], index: 0, kind: input, shape index: {}]
  %s1 = inlined_call_operand.vmem [shape: f32[64,64], index: 1, kind: input, shape index: {}]
  %s2 = inlined_call_operand.vmem [shape: f32[8,64], index: 2, kind: input, shape index: {}]
  %s3 = inlined_call_operand.vmem [shape: f32[8,8,64], index: 3, kind: output, shape index: {0}]
  %s4 = inlined_call_operand.vmem [shape: f32[8,64], index: 4, kind: output, shape index: {1}]
  %5 = xla_tuple %s3, %s4
  %s6 = sld [smem:[#allocation0]]
  $region34: #{encoder_forward.2} parent=0
    _
  %s8 = ssub.s32 1, %s6
  %s9 = scalar_select 0, %s8, %s6
  // Predicated region
  $region2: #{encoder_forward.2} parent=0 // pred_check
    _
  $region3: #{encoder_forward.2} parent=0 // pred_check_branch
    %11 = sbr.rel (0) target = $region5
  $region4: #{encoder_forward.2} parent=0 // pred_region
    _
  $region5: #{encoder_forward.2} parent=0 // pred_fallthru
    _
  // Predicated region
  $region6: #{encoder_forward.2} parent=0 // pred_check
    _
  $region7: #{encoder_forward.2} parent=0 // pred_check_branch
    %13 = sbr.rel (0) target = $region9
  $region8: #{encoder_forward.2} parent=0 // pred_region
    _
  $region9: #{encoder_forward.2} parent=0 // pred_fallthru
    _
  // Predicated region
  $region10: #{encoder_forward.2} parent=0 // pred_check
    _
  $region11: #{encoder_forward.2} parent=0 // pred_check_branch
    %15 = sbr.rel (0) target = $region13
  $region12: #{encoder_forward.2} parent=0 // pred_region
    _
  $region13: #{encoder_forward.2} parent=0 // pred_fallthru
    _
  %p16 = scmp.eq.s32.totalorder 0, 0
  // Predicated region
  $region14: #{encoder_forward.2} parent=0 // pred_check
    %p17 = pneg %p16
  $region15: #{encoder_forward.2} parent=0 // pred_check_branch
    %19 = sbr.rel (%p17) target = $region17
  $region16: #{encoder_forward.2} parent=0 // pred_region
    %v20 = vld [vmem:[%s2] sm:$0xff]
    %vm21 = vcmask 523264
    %22 = vst.msk [vmem:[%s4] sm:$0xff] %vm21, %v20
  $region17: #{encoder_forward.2} parent=0 // pred_fallthru
    _
  %v23 = vld [vmem:[%s1] sm:$0xff]
  %v24 = vld [vmem:[%s1 + $0x8] sm:$0xff]
  %v25 = vld [vmem:[%s1 + $0x10] sm:$0xff]
  %v26 = vld [vmem:[%s1 + $0x18] sm:$0xff]
  %v27 = vld [vmem:[%s1 + $0x20] sm:$0xff]
  %v28 = vld [vmem:[%s1 + $0x28] sm:$0xff]
  %v29 = vld [vmem:[%s1 + $0x30] sm:$0xff]
  %v30 = vld [vmem:[%s1 + $0x38] sm:$0xff]
  %v31 = vld [vmem:[%s4] sm:$0xff]
  %v32 = vld [vmem:[%s0] sm:$0xff]
  %vm33 = vcmask 523264
  %v35 = vsel %vm33, %v31, 0
  %37 = vmatprep.subr.mxu0 0.0
  %38 = vmatpush1.msra.mxu0 0.0
  %39 = vmatprep.subr.mxu0 0.0
  %40 = vmatpush1.msra.mxu0 0.0
  %41 = vmatprep.subr.mxu0 0.0
  %42 = vmatpush1.msra.mxu0 0.0
  %43 = vmatprep.subr.mxu0 0.0
  %44 = vmatpush1.msra.mxu0 0.0
  %45 = vmatprep.subr.mxu0 0.0
  %46 = vmatpush1.msra.mxu0 0.0
  %47 = vmatprep.subr.mxu0 0.0
  %48 = vmatpush1.msra.mxu0 0.0
  %49 = vmatprep.subr.mxu0 0.0
  %50 = vmatpush1.msra.mxu0 0.0
  %51 = vmatprep.subr.mxu0 0.0
  %52 = vmatpush1.msra.mxu0 0.0
  %53 = vmatprep.subr.mxu0 0.0
  %54 = vmatpush1.msra.mxu0 %v30
  %55 = vmatprep.subr.mxu0 0.0
  %56 = vmatpush1.msra.mxu0 %v29
  %57 = vmatprep.subr.mxu0 0.0
  %58 = vmatpush1.msra.mxu0 %v28
  %59 = vmatprep.subr.mxu0 0.0
  %60 = vmatpush1.msra.mxu0 %v27
  %61 = vmatprep.subr.mxu0 0.0
  %62 = vmatpush1.msra.mxu0 %v26
  %63 = vmatprep.subr.mxu0 0.0
  %64 = vmatpush1.msra.mxu0 %v25
  %65 = vmatprep.subr.mxu0 0.0
  %66 = vmatpush1.msra.mxu0 %v24
  %67 = vmatprep.subr.mxu0 0.0
  %68 = vmatpush1.msra.mxu0 %v23
  %69 = vmatprep.subr.mxu0 0.0
  %70 = vmatpush2.msra.mxu0 0.0
  %71 = vmatprep.subr.mxu0 0.0
  %72 = vmatpush2.msra.mxu0 0.0
  %73 = vmatprep.subr.mxu0 0.0
  %74 = vmatpush2.msra.mxu0 0.0
  %75 = vmatprep.subr.mxu0 0.0
  %76 = vmatpush2.msra.mxu0 0.0
  %77 = vmatprep.subr.mxu0 0.0
  %78 = vmatpush2.msra.mxu0 0.0
  %79 = vmatprep.subr.mxu0 0.0
  %80 = vmatpush2.msra.mxu0 0.0
  %81 = vmatprep.subr.mxu0 0.0
  %82 = vmatpush2.msra.mxu0 0.0
  %83 = vmatprep.subr.mxu0 0.0
  %84 = vmatpush2.msra.mxu0 0.0
  %85 = vmatprep.subr.mxu0 0.0
  %86 = vmatpush2.msra.mxu0 0.0
  %87 = vmatprep.subr.mxu0 0.0
  %88 = vmatpush2.msra.mxu0 0.0
  %89 = vmatprep.subr.mxu0 0.0
  %90 = vmatpush2.msra.mxu0 0.0
  %91 = vmatprep.subr.mxu0 0.0
  %92 = vmatpush2.msra.mxu0 0.0
  %93 = vmatprep.subr.mxu0 0.0
  %94 = vmatpush2.msra.mxu0 0.0
  %95 = vmatprep.subr.mxu0 0.0
  %96 = vmatpush2.msra.mxu0 0.0
  %97 = vmatprep.subr.mxu0 0.0
  %98 = vmatpush2.msra.mxu0 0.0
  %99 = vmatprep.subr.mxu0 0.0
  %100 = vmatpush2.msra.mxu0 0.0
  %101 = vmatprep.mubr.f32.mxu0 0.0
  %102 = vmatmul.mubr.f32.gmra.mxu0 %v35
  %v103 = vpop.f32.mrf.mxu0
  %v104 = vadd.f32 0.0, %v103
  %v105 = vpop.f32.mrf.mxu0
  %106 = vdwg.mxu0
  %v107 = vadd.f32 %v32, %v104
  %v108 = vtanh.pop %v107
  %109 = vst.msk [vmem:[%s3] sm:$0xff] %vm33, %v108
  %s110 = scalar_lea.vmem %s0, 8
  %v111 = vld [vmem:[%s110] sm:$0xff]
  %v113 = vsel %vm33, %v108, 0
  %115 = vmatprep.subr.mxu0 0.0
  %116 = vmatpush1.msra.mxu0 0.0
  %117 = vmatprep.subr.mxu0 0.0
  %118 = vmatpush1.msra.mxu0 0.0
  %119 = vmatprep.subr.mxu0 0.0
  %120 = vmatpush1.msra.mxu0 0.0
  %121 = vmatprep.subr.mxu0 0.0
  %122 = vmatpush1.msra.mxu0 0.0
  %123 = vmatprep.subr.mxu0 0.0
  %124 = vmatpush1.msra.mxu0 0.0
  %125 = vmatprep.subr.mxu0 0.0
  %126 = vmatpush1.msra.mxu0 0.0
  %127 = vmatprep.subr.mxu0 0.0
  %128 = vmatpush1.msra.mxu0 0.0
  %129 = vmatprep.subr.mxu0 0.0
  %130 = vmatpush1.msra.mxu0 0.0
  %131 = vmatprep.subr.mxu0 0.0
  %132 = vmatpush1.msra.mxu0 %v30
  %133 = vmatprep.subr.mxu0 0.0
  %134 = vmatpush1.msra.mxu0 %v29
  %135 = vmatprep.subr.mxu0 0.0
  %136 = vmatpush1.msra.mxu0 %v28
  %137 = vmatprep.subr.mxu0 0.0
  %138 = vmatpush1.msra.mxu0 %v27
  %139 = vmatprep.subr.mxu0 0.0
  %140 = vmatpush1.msra.mxu0 %v26
  %141 = vmatprep.subr.mxu0 0.0
  %142 = vmatpush1.msra.mxu0 %v25
  %143 = vmatprep.subr.mxu0 0.0
  %144 = vmatpush1.msra.mxu0 %v24
  %145 = vmatprep.subr.mxu0 0.0
  %146 = vmatpush1.msra.mxu0 %v23
  %147 = vmatprep.subr.mxu0 0.0
  %148 = vmatpush2.msra.mxu0 0.0
  %149 = vmatprep.subr.mxu0 0.0
  %150 = vmatpush2.msra.mxu0 0.0
  %151 = vmatprep.subr.mxu0 0.0
  %152 = vmatpush2.msra.mxu0 0.0
  %153 = vmatprep.subr.mxu0 0.0
  %154 = vmatpush2.msra.mxu0 0.0
  %155 = vmatprep.subr.mxu0 0.0
  %156 = vmatpush2.msra.mxu0 0.0
  %157 = vmatprep.subr.mxu0 0.0
  %158 = vmatpush2.msra.mxu0 0.0
  %159 = vmatprep.subr.mxu0 0.0
  %160 = vmatpush2.msra.mxu0 0.0
  %161 = vmatprep.subr.mxu0 0.0
  %162 = vmatpush2.msra.mxu0 0.0
  %163 = vmatprep.subr.mxu0 0.0
  %164 = vmatpush2.msra.mxu0 0.0
  %165 = vmatprep.subr.mxu0 0.0
  %166 = vmatpush2.msra.mxu0 0.0
  %167 = vmatprep.subr.mxu0 0.0
  %168 = vmatpush2.msra.mxu0 0.0
  %169 = vmatprep.subr.mxu0 0.0
  %170 = vmatpush2.msra.mxu0 0.0
  %171 = vmatprep.subr.mxu0 0.0
  %172 = vmatpush2.msra.mxu0 0.0
  %173 = vmatprep.subr.mxu0 0.0
  %174 = vmatpush2.msra.mxu0 0.0
  %175 = vmatprep.subr.mxu0 0.0
  %176 = vmatpush2.msra.mxu0 0.0
  %177 = vmatprep.subr.mxu0 0.0
  %178 = vmatpush2.msra.mxu0 0.0
  %179 = vmatprep.mubr.f32.mxu0 0.0
  %180 = vmatmul.mubr.f32.gmra.mxu0 %v113
  %v181 = vpop.f32.mrf.mxu0
  %v182 = vadd.f32 0.0, %v181
  %v183 = vpop.f32.mrf.mxu0
  %184 = vdwg.mxu0
  %v185 = vadd.f32 %v111, %v182
  %v186 = vtanh.pop %v185
  %s187 = scalar_lea.vmem %s3, 8
  %188 = vst.msk [vmem:[%s187] sm:$0xff] %vm33, %v186
  %s189 = scalar_lea.vmem %s0, 16
  %v190 = vld [vmem:[%s189] sm:$0xff]
  %v192 = vsel %vm33, %v186, 0
  %194 = vmatprep.subr.mxu0 0.0
  %195 = vmatpush1.msra.mxu0 0.0
  %196 = vmatprep.subr.mxu0 0.0
  %197 = vmatpush1.msra.mxu0 0.0
  %198 = vmatprep.subr.mxu0 0.0
  %199 = vmatpush1.msra.mxu0 0.0
  %200 = vmatprep.subr.mxu0 0.0
  %201 = vmatpush1.msra.mxu0 0.0
  %202 = vmatprep.subr.mxu0 0.0
  %203 = vmatpush1.msra.mxu0 0.0
  %204 = vmatprep.subr.mxu0 0.0
  %205 = vmatpush1.msra.mxu0 0.0
  %206 = vmatprep.subr.mxu0 0.0
  %207 = vmatpush1.msra.mxu0 0.0
  %208 = vmatprep.subr.mxu0 0.0
  %209 = vmatpush1.msra.mxu0 0.0
  %210 = vmatprep.subr.mxu0 0.0
  %211 = vmatpush1.msra.mxu0 %v30
  %212 = vmatprep.subr.mxu0 0.0
  %213 = vmatpush1.msra.mxu0 %v29
  %214 = vmatprep.subr.mxu0 0.0
  %215 = vmatpush1.msra.mxu0 %v28
  %216 = vmatprep.subr.mxu0 0.0
  %217 = vmatpush1.msra.mxu0 %v27
  %218 = vmatprep.subr.mxu0 0.0
  %219 = vmatpush1.msra.mxu0 %v26
  %220 = vmatprep.subr.mxu0 0.0
  %221 = vmatpush1.msra.mxu0 %v25
  %222 = vmatprep.subr.mxu0 0.0
  %223 = vmatpush1.msra.mxu0 %v24
  %224 = vmatprep.subr.mxu0 0.0
  %225 = vmatpush1.msra.mxu0 %v23
  %226 = vmatprep.subr.mxu0 0.0
  %227 = vmatpush2.msra.mxu0 0.0
  %228 = vmatprep.subr.mxu0 0.0
  %229 = vmatpush2.msra.mxu0 0.0
  %230 = vmatprep.subr.mxu0 0.0
  %231 = vmatpush2.msra.mxu0 0.0
  %232 = vmatprep.subr.mxu0 0.0
  %233 = vmatpush2.msra.mxu0 0.0
  %234 = vmatprep.subr.mxu0 0.0
  %235 = vmatpush2.msra.mxu0 0.0
  %236 = vmatprep.subr.mxu0 0.0
  %237 = vmatpush2.msra.mxu0 0.0
  %238 = vmatprep.subr.mxu0 0.0
  %239 = vmatpush2.msra.mxu0 0.0
  %240 = vmatprep.subr.mxu0 0.0
  %241 = vmatpush2.msra.mxu0 0.0
  %242 = vmatprep.subr.mxu0 0.0
  %243 = vmatpush2.msra.mxu0 0.0
  %244 = vmatprep.subr.mxu0 0.0
  %245 = vmatpush2.msra.mxu0 0.0
  %246 = vmatprep.subr.mxu0 0.0
  %247 = vmatpush2.msra.mxu0 0.0
  %248 = vmatprep.subr.mxu0 0.0
  %249 = vmatpush2.msra.mxu0 0.0
  %250 = vmatprep.subr.mxu0 0.0
  %251 = vmatpush2.msra.mxu0 0.0
  %252 = vmatprep.subr.mxu0 0.0
  %253 = vmatpush2.msra.mxu0 0.0
  %254 = vmatprep.subr.mxu0 0.0
  %255 = vmatpush2.msra.mxu0 0.0
  %256 = vmatprep.subr.mxu0 0.0
  %257 = vmatpush2.msra.mxu0 0.0
  %258 = vmatprep.mubr.f32.mxu0 0.0
  %259 = vmatmul.mubr.f32.gmra.mxu0 %v192
  %v260 = vpop.f32.mrf.mxu0
  %v261 = vadd.f32 0.0, %v260
  %v262 = vpop.f32.mrf.mxu0
  %263 = vdwg.mxu0
  %v264 = vadd.f32 %v190, %v261
  %v265 = vtanh.pop %v264
  %s266 = scalar_lea.vmem %s3, 16
  %267 = vst.msk [vmem:[%s266] sm:$0xff] %vm33, %v265
  %s268 = scalar_lea.vmem %s0, 24
  %v269 = vld [vmem:[%s268] sm:$0xff]
  %v271 = vsel %vm33, %v265, 0
  %273 = vmatprep.subr.mxu0 0.0
  %274 = vmatpush1.msra.mxu0 0.0
  %275 = vmatprep.subr.mxu0 0.0
  %276 = vmatpush1.msra.mxu0 0.0
  %277 = vmatprep.subr.mxu0 0.0
  %278 = vmatpush1.msra.mxu0 0.0
  %279 = vmatprep.subr.mxu0 0.0
  %280 = vmatpush1.msra.mxu0 0.0
  %281 = vmatprep.subr.mxu0 0.0
  %282 = vmatpush1.msra.mxu0 0.0
  %283 = vmatprep.subr.mxu0 0.0
  %284 = vmatpush1.msra.mxu0 0.0
  %285 = vmatprep.subr.mxu0 0.0
  %286 = vmatpush1.msra.mxu0 0.0
  %287 = vmatprep.subr.mxu0 0.0
  %288 = vmatpush1.msra.mxu0 0.0
  %289 = vmatprep.subr.mxu0 0.0
  %290 = vmatpush1.msra.mxu0 %v30
  %291 = vmatprep.subr.mxu0 0.0
  %292 = vmatpush1.msra.mxu0 %v29
  %293 = vmatprep.subr.mxu0 0.0
  %294 = vmatpush1.msra.mxu0 %v28
  %295 = vmatprep.subr.mxu0 0.0
  %296 = vmatpush1.msra.mxu0 %v27
  %297 = vmatprep.subr.mxu0 0.0
  %298 = vmatpush1.msra.mxu0 %v26
  %299 = vmatprep.subr.mxu0 0.0
  %300 = vmatpush1.msra.mxu0 %v25
  %301 = vmatprep.subr.mxu0 0.0
  %302 = vmatpush1.msra.mxu0 %v24
  %303 = vmatprep.subr.mxu0 0.0
  %304 = vmatpush1.msra.mxu0 %v23
  %305 = vmatprep.subr.mxu0 0.0
  %306 = vmatpush2.msra.mxu0 0.0
  %307 = vmatprep.subr.mxu0 0.0
  %308 = vmatpush2.msra.mxu0 0.0
  %309 = vmatprep.subr.mxu0 0.0
  %310 = vmatpush2.msra.mxu0 0.0
  %311 = vmatprep.subr.mxu0 0.0
  %312 = vmatpush2.msra.mxu0 0.0
  %313 = vmatprep.subr.mxu0 0.0
  %314 = vmatpush2.msra.mxu0 0.0
  %315 = vmatprep.subr.mxu0 0.0
  %316 = vmatpush2.msra.mxu0 0.0
  %317 = vmatprep.subr.mxu0 0.0
  %318 = vmatpush2.msra.mxu0 0.0
  %319 = vmatprep.subr.mxu0 0.0
  %320 = vmatpush2.msra.mxu0 0.0
  %321 = vmatprep.subr.mxu0 0.0
  %322 = vmatpush2.msra.mxu0 0.0
  %323 = vmatprep.subr.mxu0 0.0
  %324 = vmatpush2.msra.mxu0 0.0
  %325 = vmatprep.subr.mxu0 0.0
  %326 = vmatpush2.msra.mxu0 0.0
  %327 = vmatprep.subr.mxu0 0.0
  %328 = vmatpush2.msra.mxu0 0.0
  %329 = vmatprep.subr.mxu0 0.0
  %330 = vmatpush2.msra.mxu0 0.0
  %331 = vmatprep.subr.mxu0 0.0
  %332 = vmatpush2.msra.mxu0 0.0
  %333 = vmatprep.subr.mxu0 0.0
  %334 = vmatpush2.msra.mxu0 0.0
  %335 = vmatprep.subr.mxu0 0.0
  %336 = vmatpush2.msra.mxu0 0.0
  %337 = vmatprep.mubr.f32.mxu0 0.0
  %338 = vmatmul.mubr.f32.gmra.mxu0 %v271
  %v339 = vpop.f32.mrf.mxu0
  %v340 = vadd.f32 0.0, %v339
  %v341 = vpop.f32.mrf.mxu0
  %342 = vdwg.mxu0
  %v343 = vadd.f32 %v269, %v340
  %v344 = vtanh.pop %v343
  %s345 = scalar_lea.vmem %s3, 24
  %346 = vst.msk [vmem:[%s345] sm:$0xff] %vm33, %v344
  %s347 = scalar_lea.vmem %s0, 32
  %v348 = vld [vmem:[%s347] sm:$0xff]
  %v350 = vsel %vm33, %v344, 0
  %352 = vmatprep.subr.mxu0 0.0
  %353 = vmatpush1.msra.mxu0 0.0
  %354 = vmatprep.subr.mxu0 0.0
  %355 = vmatpush1.msra.mxu0 0.0
  %356 = vmatprep.subr.mxu0 0.0
  %357 = vmatpush1.msra.mxu0 0.0
  %358 = vmatprep.subr.mxu0 0.0
  %359 = vmatpush1.msra.mxu0 0.0
  %360 = vmatprep.subr.mxu0 0.0
  %361 = vmatpush1.msra.mxu0 0.0
  %362 = vmatprep.subr.mxu0 0.0
  %363 = vmatpush1.msra.mxu0 0.0
  %364 = vmatprep.subr.mxu0 0.0
  %365 = vmatpush1.msra.mxu0 0.0
  %366 = vmatprep.subr.mxu0 0.0
  %367 = vmatpush1.msra.mxu0 0.0
  %368 = vmatprep.subr.mxu0 0.0
  %369 = vmatpush1.msra.mxu0 %v30
  %370 = vmatprep.subr.mxu0 0.0
  %371 = vmatpush1.msra.mxu0 %v29
  %372 = vmatprep.subr.mxu0 0.0
  %373 = vmatpush1.msra.mxu0 %v28
  %374 = vmatprep.subr.mxu0 0.0
  %375 = vmatpush1.msra.mxu0 %v27
  %376 = vmatprep.subr.mxu0 0.0
  %377 = vmatpush1.msra.mxu0 %v26
  %378 = vmatprep.subr.mxu0 0.0
  %379 = vmatpush1.msra.mxu0 %v25
  %380 = vmatprep.subr.mxu0 0.0
  %381 = vmatpush1.msra.mxu0 %v24
  %382 = vmatprep.subr.mxu0 0.0
  %383 = vmatpush1.msra.mxu0 %v23
  %384 = vmatprep.subr.mxu0 0.0
  %385 = vmatpush2.msra.mxu0 0.0
  %386 = vmatprep.subr.mxu0 0.0
  %387 = vmatpush2.msra.mxu0 0.0
  %388 = vmatprep.subr.mxu0 0.0
  %389 = vmatpush2.msra.mxu0 0.0
  %390 = vmatprep.subr.mxu0 0.0
  %391 = vmatpush2.msra.mxu0 0.0
  %392 = vmatprep.subr.mxu0 0.0
  %393 = vmatpush2.msra.mxu0 0.0
  %394 = vmatprep.subr.mxu0 0.0
  %395 = vmatpush2.msra.mxu0 0.0
  %396 = vmatprep.subr.mxu0 0.0
  %397 = vmatpush2.msra.mxu0 0.0
  %398 = vmatprep.subr.mxu0 0.0
  %399 = vmatpush2.msra.mxu0 0.0
  %400 = vmatprep.subr.mxu0 0.0
  %401 = vmatpush2.msra.mxu0 0.0
  %402 = vmatprep.subr.mxu0 0.0
  %403 = vmatpush2.msra.mxu0 0.0
  %404 = vmatprep.subr.mxu0 0.0
  %405 = vmatpush2.msra.mxu0 0.0
  %406 = vmatprep.subr.mxu0 0.0
  %407 = vmatpush2.msra.mxu0 0.0
  %408 = vmatprep.subr.mxu0 0.0
  %409 = vmatpush2.msra.mxu0 0.0
  %410 = vmatprep.subr.mxu0 0.0
  %411 = vmatpush2.msra.mxu0 0.0
  %412 = vmatprep.subr.mxu0 0.0
  %413 = vmatpush2.msra.mxu0 0.0
  %414 = vmatprep.subr.mxu0 0.0
  %415 = vmatpush2.msra.mxu0 0.0
  %416 = vmatprep.mubr.f32.mxu0 0.0
  %417 = vmatmul.mubr.f32.gmra.mxu0 %v350
  %v418 = vpop.f32.mrf.mxu0
  %v419 = vadd.f32 0.0, %v418
  %v420 = vpop.f32.mrf.mxu0
  %421 = vdwg.mxu0
  %v422 = vadd.f32 %v348, %v419
  %v423 = vtanh.pop %v422
  %s424 = scalar_lea.vmem %s3, 32
  %425 = vst.msk [vmem:[%s424] sm:$0xff] %vm33, %v423
  %s426 = scalar_lea.vmem %s0, 40
  %v427 = vld [vmem:[%s426] sm:$0xff]
  %v429 = vsel %vm33, %v423, 0
  %431 = vmatprep.subr.mxu0 0.0
  %432 = vmatpush1.msra.mxu0 0.0
  %433 = vmatprep.subr.mxu0 0.0
  %434 = vmatpush1.msra.mxu0 0.0
  %435 = vmatprep.subr.mxu0 0.0
  %436 = vmatpush1.msra.mxu0 0.0
  %437 = vmatprep.subr.mxu0 0.0
  %438 = vmatpush1.msra.mxu0 0.0
  %439 = vmatprep.subr.mxu0 0.0
  %440 = vmatpush1.msra.mxu0 0.0
  %441 = vmatprep.subr.mxu0 0.0
  %442 = vmatpush1.msra.mxu0 0.0
  %443 = vmatprep.subr.mxu0 0.0
  %444 = vmatpush1.msra.mxu0 0.0
  %445 = vmatprep.subr.mxu0 0.0
  %446 = vmatpush1.msra.mxu0 0.0
  %447 = vmatprep.subr.mxu0 0.0
  %448 = vmatpush1.msra.mxu0 %v30
  %449 = vmatprep.subr.mxu0 0.0
  %450 = vmatpush1.msra.mxu0 %v29
  %451 = vmatprep.subr.mxu0 0.0
  %452 = vmatpush1.msra.mxu0 %v28
  %453 = vmatprep.subr.mxu0 0.0
  %454 = vmatpush1.msra.mxu0 %v27
  %455 = vmatprep.subr.mxu0 0.0
  %456 = vmatpush1.msra.mxu0 %v26
  %457 = vmatprep.subr.mxu0 0.0
  %458 = vmatpush1.msra.mxu0 %v25
  %459 = vmatprep.subr.mxu0 0.0
  %460 = vmatpush1.msra.mxu0 %v24
  %461 = vmatprep.subr.mxu0 0.0
  %462 = vmatpush1.msra.mxu0 %v23
  %463 = vmatprep.subr.mxu0 0.0
  %464 = vmatpush2.msra.mxu0 0.0
  %465 = vmatprep.subr.mxu0 0.0
  %466 = vmatpush2.msra.mxu0 0.0
  %467 = vmatprep.subr.mxu0 0.0
  %468 = vmatpush2.msra.mxu0 0.0
  %469 = vmatprep.subr.mxu0 0.0
  %470 = vmatpush2.msra.mxu0 0.0
  %471 = vmatprep.subr.mxu0 0.0
  %472 = vmatpush2.msra.mxu0 0.0
  %473 = vmatprep.subr.mxu0 0.0
  %474 = vmatpush2.msra.mxu0 0.0
  %475 = vmatprep.subr.mxu0 0.0
  %476 = vmatpush2.msra.mxu0 0.0
  %477 = vmatprep.subr.mxu0 0.0
  %478 = vmatpush2.msra.mxu0 0.0
  %479 = vmatprep.subr.mxu0 0.0
  %480 = vmatpush2.msra.mxu0 0.0
  %481 = vmatprep.subr.mxu0 0.0
  %482 = vmatpush2.msra.mxu0 0.0
  %483 = vmatprep.subr.mxu0 0.0
  %484 = vmatpush2.msra.mxu0 0.0
  %485 = vmatprep.subr.mxu0 0.0
  %486 = vmatpush2.msra.mxu0 0.0
  %487 = vmatprep.subr.mxu0 0.0
  %488 = vmatpush2.msra.mxu0 0.0
  %489 = vmatprep.subr.mxu0 0.0
  %490 = vmatpush2.msra.mxu0 0.0
  %491 = vmatprep.subr.mxu0 0.0
  %492 = vmatpush2.msra.mxu0 0.0
  %493 = vmatprep.subr.mxu0 0.0
  %494 = vmatpush2.msra.mxu0 0.0
  %495 = vmatprep.mubr.f32.mxu0 0.0
  %496 = vmatmul.mubr.f32.gmra.mxu0 %v429
  %v497 = vpop.f32.mrf.mxu0
  %v498 = vadd.f32 0.0, %v497
  %v499 = vpop.f32.mrf.mxu0
  %500 = vdwg.mxu0
  %v501 = vadd.f32 %v427, %v498
  %v502 = vtanh.pop %v501
  %s503 = scalar_lea.vmem %s3, 40
  %504 = vst.msk [vmem:[%s503] sm:$0xff] %vm33, %v502
  %s505 = scalar_lea.vmem %s0, 48
  %v506 = vld [vmem:[%s505] sm:$0xff]
  %v508 = vsel %vm33, %v502, 0
  %510 = vmatprep.subr.mxu0 0.0
  %511 = vmatpush1.msra.mxu0 0.0
  %512 = vmatprep.subr.mxu0 0.0
  %513 = vmatpush1.msra.mxu0 0.0
  %514 = vmatprep.subr.mxu0 0.0
  %515 = vmatpush1.msra.mxu0 0.0
  %516 = vmatprep.subr.mxu0 0.0
  %517 = vmatpush1.msra.mxu0 0.0
  %518 = vmatprep.subr.mxu0 0.0
  %519 = vmatpush1.msra.mxu0 0.0
  %520 = vmatprep.subr.mxu0 0.0
  %521 = vmatpush1.msra.mxu0 0.0
  %522 = vmatprep.subr.mxu0 0.0
  %523 = vmatpush1.msra.mxu0 0.0
  %524 = vmatprep.subr.mxu0 0.0
  %525 = vmatpush1.msra.mxu0 0.0
  %526 = vmatprep.subr.mxu0 0.0
  %527 = vmatpush1.msra.mxu0 %v30
  %528 = vmatprep.subr.mxu0 0.0
  %529 = vmatpush1.msra.mxu0 %v29
  %530 = vmatprep.subr.mxu0 0.0
  %531 = vmatpush1.msra.mxu0 %v28
  %532 = vmatprep.subr.mxu0 0.0
  %533 = vmatpush1.msra.mxu0 %v27
  %534 = vmatprep.subr.mxu0 0.0
  %535 = vmatpush1.msra.mxu0 %v26
  %536 = vmatprep.subr.mxu0 0.0
  %537 = vmatpush1.msra.mxu0 %v25
  %538 = vmatprep.subr.mxu0 0.0
  %539 = vmatpush1.msra.mxu0 %v24
  %540 = vmatprep.subr.mxu0 0.0
  %541 = vmatpush1.msra.mxu0 %v23
  %542 = vmatprep.subr.mxu0 0.0
  %543 = vmatpush2.msra.mxu0 0.0
  %544 = vmatprep.subr.mxu0 0.0
  %545 = vmatpush2.msra.mxu0 0.0
  %546 = vmatprep.subr.mxu0 0.0
  %547 = vmatpush2.msra.mxu0 0.0
  %548 = vmatprep.subr.mxu0 0.0
  %549 = vmatpush2.msra.mxu0 0.0
  %550 = vmatprep.subr.mxu0 0.0
  %551 = vmatpush2.msra.mxu0 0.0
  %552 = vmatprep.subr.mxu0 0.0
  %553 = vmatpush2.msra.mxu0 0.0
  %554 = vmatprep.subr.mxu0 0.0
  %555 = vmatpush2.msra.mxu0 0.0
  %556 = vmatprep.subr.mxu0 0.0
  %557 = vmatpush2.msra.mxu0 0.0
  %558 = vmatprep.subr.mxu0 0.0
  %559 = vmatpush2.msra.mxu0 0.0
  %560 = vmatprep.subr.mxu0 0.0
  %561 = vmatpush2.msra.mxu0 0.0
  %562 = vmatprep.subr.mxu0 0.0
  %563 = vmatpush2.msra.mxu0 0.0
  %564 = vmatprep.subr.mxu0 0.0
  %565 = vmatpush2.msra.mxu0 0.0
  %566 = vmatprep.subr.mxu0 0.0
  %567 = vmatpush2.msra.mxu0 0.0
  %568 = vmatprep.subr.mxu0 0.0
  %569 = vmatpush2.msra.mxu0 0.0
  %570 = vmatprep.subr.mxu0 0.0
  %571 = vmatpush2.msra.mxu0 0.0
  %572 = vmatprep.subr.mxu0 0.0
  %573 = vmatpush2.msra.mxu0 0.0
  %574 = vmatprep.mubr.f32.mxu0 0.0
  %575 = vmatmul.mubr.f32.gmra.mxu0 %v508
  %v576 = vpop.f32.mrf.mxu0
  %v577 = vadd.f32 0.0, %v576
  %v578 = vpop.f32.mrf.mxu0
  %579 = vdwg.mxu0
  %v580 = vadd.f32 %v506, %v577
  %v581 = vtanh.pop %v580
  %s582 = scalar_lea.vmem %s3, 48
  %583 = vst.msk [vmem:[%s582] sm:$0xff] %vm33, %v581
  %s584 = scalar_lea.vmem %s0, 56
  %v585 = vld [vmem:[%s584] sm:$0xff]
  %v587 = vsel %vm33, %v581, 0
  %589 = vmatprep.subr.mxu0 0.0
  %590 = vmatpush1.msra.mxu0 0.0
  %591 = vmatprep.subr.mxu0 0.0
  %592 = vmatpush1.msra.mxu0 0.0
  %593 = vmatprep.subr.mxu0 0.0
  %594 = vmatpush1.msra.mxu0 0.0
  %595 = vmatprep.subr.mxu0 0.0
  %596 = vmatpush1.msra.mxu0 0.0
  %597 = vmatprep.subr.mxu0 0.0
  %598 = vmatpush1.msra.mxu0 0.0
  %599 = vmatprep.subr.mxu0 0.0
  %600 = vmatpush1.msra.mxu0 0.0
  %601 = vmatprep.subr.mxu0 0.0
  %602 = vmatpush1.msra.mxu0 0.0
  %603 = vmatprep.subr.mxu0 0.0
  %604 = vmatpush1.msra.mxu0 0.0
  %605 = vmatprep.subr.mxu0 0.0
  %606 = vmatpush1.msra.mxu0 %v30
  %607 = vmatprep.subr.mxu0 0.0
  %608 = vmatpush1.msra.mxu0 %v29
  %609 = vmatprep.subr.mxu0 0.0
  %610 = vmatpush1.msra.mxu0 %v28
  %611 = vmatprep.subr.mxu0 0.0
  %612 = vmatpush1.msra.mxu0 %v27
  %613 = vmatprep.subr.mxu0 0.0
  %614 = vmatpush1.msra.mxu0 %v26
  %615 = vmatprep.subr.mxu0 0.0
  %616 = vmatpush1.msra.mxu0 %v25
  %617 = vmatprep.subr.mxu0 0.0
  %618 = vmatpush1.msra.mxu0 %v24
  %619 = vmatprep.subr.mxu0 0.0
  %620 = vmatpush1.msra.mxu0 %v23
  %621 = vmatprep.subr.mxu0 0.0
  %622 = vmatpush2.msra.mxu0 0.0
  %623 = vmatprep.subr.mxu0 0.0
  %624 = vmatpush2.msra.mxu0 0.0
  %625 = vmatprep.subr.mxu0 0.0
  %626 = vmatpush2.msra.mxu0 0.0
  %627 = vmatprep.subr.mxu0 0.0
  %628 = vmatpush2.msra.mxu0 0.0
  %629 = vmatprep.subr.mxu0 0.0
  %630 = vmatpush2.msra.mxu0 0.0
  %631 = vmatprep.subr.mxu0 0.0
  %632 = vmatpush2.msra.mxu0 0.0
  %633 = vmatprep.subr.mxu0 0.0
  %634 = vmatpush2.msra.mxu0 0.0
  %635 = vmatprep.subr.mxu0 0.0
  %636 = vmatpush2.msra.mxu0 0.0
  %637 = vmatprep.subr.mxu0 0.0
  %638 = vmatpush2.msra.mxu0 0.0
  %639 = vmatprep.subr.mxu0 0.0
  %640 = vmatpush2.msra.mxu0 0.0
  %641 = vmatprep.subr.mxu0 0.0
  %642 = vmatpush2.msra.mxu0 0.0
  %643 = vmatprep.subr.mxu0 0.0
  %644 = vmatpush2.msra.mxu0 0.0
  %645 = vmatprep.subr.mxu0 0.0
  %646 = vmatpush2.msra.mxu0 0.0
  %647 = vmatprep.subr.mxu0 0.0
  %648 = vmatpush2.msra.mxu0 0.0
  %649 = vmatprep.subr.mxu0 0.0
  %650 = vmatpush2.msra.mxu0 0.0
  %651 = vmatprep.subr.mxu0 0.0
  %652 = vmatpush2.msra.mxu0 0.0
  %653 = vmatprep.mubr.f32.mxu0 0.0
  %654 = vmatmul.mubr.f32.gmra.mxu0 %v587
  %v655 = vpop.f32.mrf.mxu0
  %v656 = vadd.f32 0.0, %v655
  %v657 = vpop.f32.mrf.mxu0
  %658 = vdwg.mxu0
  %v659 = vadd.f32 %v585, %v656
  %v660 = vtanh.pop %v659
  %s661 = scalar_lea.vmem %s3, 56
  %662 = vst.msk [vmem:[%s661] sm:$0xff] %vm33, %v660
  %663 = vst.msk [vmem:[%s4] sm:$0xff] %vm33, %v660
  // Predicated region
  $region18: #{encoder_forward.2} parent=0 // pred_check
    _
  $region19: #{encoder_forward.2} parent=0 // pred_check_branch
    %665 = sbr.rel (0) target = $region21
  $region20: #{encoder_forward.2} parent=0 // pred_region
    _
  $region21: #{encoder_forward.2} parent=0 // pred_fallthru
    _
  // Predicated region
  $region22: #{encoder_forward.2} parent=0 // pred_check
    _
  $region23: #{encoder_forward.2} parent=0 // pred_check_branch
    %667 = sbr.rel (0) target = $region25
  $region24: #{encoder_forward.2} parent=0 // pred_region
    _
  $region25: #{encoder_forward.2} parent=0 // pred_fallthru
    _
  // Predicated region
  $region26: #{encoder_forward.2} parent=0 // pred_check
    _
  $region27: #{encoder_forward.2} parent=0 // pred_check_branch
    %669 = sbr.rel (0) target = $region29
  $region28: #{encoder_forward.2} parent=0 // pred_region
    _
  $region29: #{encoder_forward.2} parent=0 // pred_fallthru
    _
  // Predicated region
  $region30: #{encoder_forward.2} parent=0 // pred_check
    _
  $region31: #{encoder_forward.2} parent=0 // pred_check_branch
    %671 = sbr.rel (0) target = $region33
  $region32: #{encoder_forward.2} parent=0 // pred_region
    _
  $region33: #{encoder_forward.2} parent=0 // pred_fallthru
    _

</llo_original>
